<compile_context>
chip_gen: v6e
topology: v6e:2x2x1
jax: 0.10.0
libtpu: 0.0.40
codegen_flags: <defaults>
</compile_context>

<pallas_src>
import functools

import jax
import jax.numpy as jnp
from jax.experimental import pallas as pl
from jax.experimental.pallas import tpu as pltpu

EPS = 1e-5  # matches torch.nn.LayerNorm default
MiB = 1024 * 1024


def _round_up(a, m):
    return (a + m - 1) // m * m


def _vmem_capacity_bytes():
    """Per-core VMEM capacity; conservative fallback (v7x: 64 MiB/TC)."""
    try:
        info = pltpu.get_tpu_info()
        cap = getattr(info, "vmem_capacity_bytes", None)
        if cap:
            return int(cap)
    except Exception:
        pass
    return 64 * MiB


def _choose_tile(n_rows, k_pad, e_pad, act_bytes, w_bytes, out_bytes):
    """Row-tile size + vmem limit, accounting for the resident weight blocks."""
    cap = _vmem_capacity_bytes()
    # Leave headroom below per-core VMEM: v7x (64 MiB/TC) -> ~48 MiB,
    # v5e/v6e (128 MiB) -> 96 MiB, as suggested by the perf review.
    vmem_limit = max(32 * MiB, min(cap - 16 * MiB, 96 * MiB))

    # Grid-invariant blocks resident in VMEM. Assume the pipeliner keeps two
    # copies (default buffering); under "parallel" megacore sharding each
    # TensorCore additionally holds its own copy within its own VMEM budget.
    # TODO(synk): pl.Buffered(1) on the weight spec would reclaim one copy.
    resident = 2 * (k_pad * e_pad * w_bytes + 3 * e_pad * 4)

    budget = vmem_limit - resident - 2 * MiB          # compiler-scratch headroom
    per_row = (2 * k_pad * act_bytes + 2 * e_pad * out_bytes   # dbl-buffered tiles
               + 8 * k_pad + 8 * e_pad)                        # in-kernel f32 temps

    tm = max(8, budget // per_row)
    tm = min(tm, 2048)
    if tm >= n_rows:
        tm = n_rows                      # one block covering the whole slab
    elif tm >= 128:
        tm = (tm // 128) * 128           # MXU-friendly M tile
    elif act_bytes == 2 and tm >= 16:
        tm = (tm // 16) * 16             # bf16 sublane packing (16x128 vreg)
    else:
        tm = max(8, (tm // 8) * 8)
    return int(tm), int(vmem_limit)


def _patch_embed_kernel(x_ref, w_ref, p_ref, o_ref, *, patch_dim, embed_dim):
    # x_ref: (TM, k_pad)   w_ref: (k_pad, e_pad)
    # p_ref: (3, e_pad) f32 rows = [folded bias, post-LN gamma, post-LN beta]
    # o_ref: (TM, e_pad)
    x = x_ref[...].astype(jnp.float32)

    # Pre-LN over the *real* patch_dim. Padded K columns of x are exactly zero,
    # so the plain sums already cover exactly patch_dim entries (no mask needed).
    inv_k = 1.0 / float(patch_dim)
    mu1 = jnp.sum(x, axis=-1, keepdims=True) * inv_k
    ex1 = jnp.sum(x * x, axis=-1, keepdims=True) * inv_k
    var1 = jnp.maximum(ex1 - mu1 * mu1, 0.0)          # E[x^2]-mu^2 (fine for LN)
    xn = (x - mu1) * jax.lax.rsqrt(var1 + EPS)
    # Padded-K columns of xn equal (-mu1 * rsqrt); the matching weight rows are
    # zero, so they contribute nothing to the projection.

    # Projection on the MXU, f32 accumulation. The pre-LN affine is already
    # folded into w_ref / the packed bias.
    y = jnp.dot(xn.astype(w_ref.dtype), w_ref[...],
                preferred_element_type=jnp.float32)
    p = p_ref[...]
    y = y + p[0:1, :]                                  # folded bias

    # Post-LN over the *real* embed_dim. Padded columns of y are exactly zero
    # (zero weight columns + zero bias), so sums need no mask.
    inv_e = 1.0 / float(embed_dim)
    mu2 = jnp.sum(y, axis=-1, keepdims=True) * inv_e
    ey2 = jnp.sum(y * y, axis=-1, keepdims=True) * inv_e
    var2 = jnp.maximum(ey2 - mu2 * mu2, 0.0)
    yn = (y - mu2) * jax.lax.rsqrt(var2 + EPS) * p[1:2, :] + p[2:3, :]
    # Padded gamma/beta columns are zero -> padded output columns are zero.

    o_ref[...] = yn.astype(o_ref.dtype)


def patch_embed_forward(x, params, patch_size, *, use_bf16_matmul=True,
                        out_dtype=None):
    """x: (B, C, H, W) NCHW. Returns (B, num_patches, embed_dim)."""
    B, C, H, W = x.shape
    ph, pw = patch_size
    gh, gw = H // ph, W // pw
    num_patches = gh * gw
    patch_dim = C * ph * pw
    embed_dim = params["proj_w"].shape[1]
    out_dtype = x.dtype if out_dtype is None else out_dtype

    act_dtype = jnp.bfloat16 if use_bf16_matmul else jnp.float32
    w_dtype = jnp.bfloat16 if use_bf16_matmul else jnp.float32

    k_pad = _round_up(patch_dim, 128)                  # dense MXU K (v5e win)
    e_pad = max(128, _round_up(embed_dim, 128))        # lane-dense output width

    # glue: einops 'b c (h ph) (w pw) -> b (h w) (ph pw c)'; the cast (and the
    # K zero-pad when ragged) fuse into the transpose materialization, so the
    # intermediate HBM slab is bf16 on the bf16 path (half the round trip).
    # TODO(synk): folding patch extraction into the kernel (grid over (B, gh),
    # (ph pw c) reorder done in VMEM) would remove this intermediate entirely.
    xp = x.reshape(B, C, gh, ph, gw, pw)
    xp = jnp.transpose(xp, (0, 2, 4, 3, 5, 1)).reshape(B * num_patches, patch_dim)
    xp = xp.astype(act_dtype)
    if k_pad != patch_dim:
        xp = jnp.pad(xp, ((0, 0), (0, k_pad - patch_dim)))

    # Fold the pre-LN affine into the projection: W' = diag(g1) @ W, b' = b1 @ W + b.
    w = params["proj_w"].astype(jnp.float32)
    g1 = params["patch_norm_w"].astype(jnp.float32)
    b1 = params["patch_norm_b"].astype(jnp.float32)
    w_fold = w * g1[:, None]
    b_fold = b1 @ w + params["proj_b"].astype(jnp.float32)

    w_p = jnp.pad(w_fold, ((0, k_pad - patch_dim),
                           (0, e_pad - embed_dim))).astype(w_dtype)

    def padrow(v):
        v = v.reshape(1, -1).astype(jnp.float32)
        return jnp.pad(v, ((0, 0), (0, e_pad - embed_dim)))

    pvec = jnp.concatenate(
        [padrow(b_fold), padrow(params["post_norm_w"]),
         padrow(params["post_norm_b"])], axis=0)       # (3, e_pad)

    N = xp.shape[0]
    act_bytes = jnp.dtype(act_dtype).itemsize
    w_bytes = jnp.dtype(w_dtype).itemsize
    out_bytes = jnp.dtype(out_dtype).itemsize
    TM, vmem_limit = _choose_tile(N, k_pad, e_pad, act_bytes, w_bytes, out_bytes)
    grid = (pl.cdiv(N, TM),)

    cost = pl.CostEstimate(
        flops=2 * N * k_pad * e_pad + 12 * N * (k_pad + e_pad),
        transcendentals=2 * N,
        bytes_accessed=(N * k_pad * act_bytes + k_pad * e_pad * w_bytes
                        + 3 * e_pad * 4 + N * e_pad * out_bytes))

    kernel = functools.partial(_patch_embed_kernel, patch_dim=patch_dim,
                               embed_dim=embed_dim)

    out = pl.pallas_call(
        kernel,
        out_shape=jax.ShapeDtypeStruct((N, e_pad), out_dtype),
        grid_spec=pltpu.PrefetchScalarGridSpec(
            num_scalar_prefetch=0,
            grid=grid,
            in_specs=[
                pl.BlockSpec((TM, k_pad), lambda i: (i, 0)),      # activations
                pl.BlockSpec((k_pad, e_pad), lambda i: (0, 0)),   # folded weight
                pl.BlockSpec((3, e_pad), lambda i: (0, 0)),       # [b', g2, b2]
            ],
            out_specs=pl.BlockSpec((TM, e_pad), lambda i: (i, 0)),
        ),
        compiler_params=pltpu.CompilerParams(
            dimension_semantics=("parallel",),
            vmem_limit_bytes=vmem_limit,
        ),
        cost_estimate=cost,
    )(xp, w_p, pvec)

    if e_pad != embed_dim:
        out = out[:, :embed_dim]
    return out.reshape(B, num_patches, embed_dim)


def init_params(key, in_chans, patch_size, embed_dim):
    ph, pw = patch_size
    patch_dim = in_chans * ph * pw
    kw, kb, kg1, kb1, kg2, kb2 = jax.random.split(key, 6)
    limit = 1.0 / (patch_dim ** 0.5)
    # Non-trivial LayerNorm affines so the g1/b1-into-W fold is actually tested.
    return {
        "patch_norm_w": 1.0 + 0.1 * jax.random.normal(kg1, (patch_dim,), jnp.float32),
        "patch_norm_b": 0.05 * jax.random.normal(kb1, (patch_dim,), jnp.float32),
        # stored as (patch_dim, embed_dim) == torch weight (embed_dim, patch_dim).T
        "proj_w": jax.random.uniform(kw, (patch_dim, embed_dim), jnp.float32,
                                     -limit, limit),
        "proj_b": jax.random.uniform(kb, (embed_dim,), jnp.float32, -limit, limit),
        "post_norm_w": 1.0 + 0.1 * jax.random.normal(kg2, (embed_dim,), jnp.float32),
        "post_norm_b": 0.05 * jax.random.normal(kb2, (embed_dim,), jnp.float32),
    }


def _reference(x, params, patch_size):
    """Pure-JAX f32 reference matching the PyTorch module."""
    B, C, H, W = x.shape
    ph, pw = patch_size
    gh, gw = H // ph, W // pw
    patch_dim = C * ph * pw
    xp = x.reshape(B, C, gh, ph, gw, pw).transpose(0, 2, 4, 3, 5, 1)
    xp = xp.reshape(B, gh * gw, patch_dim)
    mu = xp.mean(-1, keepdims=True)
    var = ((xp - mu) ** 2).mean(-1, keepdims=True)
    xn = (xp - mu) / jnp.sqrt(var + EPS)
    xn = xn * params["patch_norm_w"] + params["patch_norm_b"]
    y = xn @ params["proj_w"] + params["proj_b"]
    mu2 = y.mean(-1, keepdims=True)
    var2 = ((y - mu2) ** 2).mean(-1, keepdims=True)
    yn = (y - mu2) / jnp.sqrt(var2 + EPS)
    return yn * params["post_norm_w"] + params["post_norm_b"]


if __name__ == "__main__":
    root = jax.random.PRNGKey(0)

    def check(case_key, B, C, H, W, patch_size, embed_dim):
        kx, kp = jax.random.split(case_key)
        x = jax.random.normal(kx, (B, C, H, W), jnp.float32)
        params = init_params(kp, C, patch_size, embed_dim)
        ref = _reference(x, params, patch_size)

        # bf16 activations + bf16 MXU operands (f32 accumulation): loose tolerance
        out_bf16 = patch_embed_forward(x, params, patch_size, use_bf16_matmul=True)
        jax.block_until_ready(out_bf16)
        assert out_bf16.shape == ref.shape
        assert bool(jnp.allclose(out_bf16, ref, atol=5e-2, rtol=5e-2))

        # pure-f32 path: tight tolerance (validates fold / padding / LN math)
        out_f32 = patch_embed_forward(x, params, patch_size, use_bf16_matmul=False)
        jax.block_until_ready(out_f32)
        assert bool(jnp.allclose(out_f32, ref, atol=1e-4, rtol=1e-4))

        # bf16 output stream (downstream-ViT case): exercise the path
        out_b16 = patch_embed_forward(x, params, patch_size,
                                      out_dtype=jnp.bfloat16)
        jax.block_until_ready(out_b16)
        assert out_b16.dtype == jnp.bfloat16
        assert bool(jnp.isfinite(out_b16.astype(jnp.float32)).all())

    k1, k2 = jax.random.split(root)
    # patch_dim = 256 (128-aligned K), embed_dim 32 (padded to 128 lanes)
    check(k1, 2, 4, 16, 16, (8, 8), 32)
    # patch_dim = 192 (ragged K -> zero-padded to 256), embed_dim 40 (ragged E)
    check(k2, 2, 3, 16, 16, (8, 8), 40)

    print("KERNEL_OK")
</pallas_src>

<mosaic_0001>
module attributes {stable_mosaic.version = 11 : i64} {
  func.func @_patch_embed_kernel(%arg0: i32, %arg1: memref<8x256xbf16, #tpu.memory_space<vmem>>, %arg2: memref<256x128xbf16, #tpu.memory_space<vmem>>, %arg3: memref<3x128xf32, #tpu.memory_space<vmem>>, %arg4: memref<8x128xf32, #tpu.memory_space<vmem>>) attributes {dimension_semantics = [#tpu.dimension_semantics<parallel>], iteration_bounds = array<i64: 1>, scalar_prefetch = 0 : i64, scratch_operands = 0 : i64, tpu.core_type = #tpu.core_type<tc>, window_params = [{transform_indices = @transform_0, window_bounds = array<i64: 8, 256>}, {pipeline_mode = #tpu.pipeline_mode<synchronous>, transform_indices = @transform_1, window_bounds = array<i64: 256, 128>}, {pipeline_mode = #tpu.pipeline_mode<synchronous>, transform_indices = @transform_2, window_bounds = array<i64: 3, 128>}, {transform_indices = @transform_3, window_bounds = array<i64: 8, 128>}]} {
    %c0 = arith.constant 0 : index
    %c0_0 = arith.constant 0 : index
    %0 = vector.load %arg1[%c0, %c0_0] : memref<8x256xbf16, #tpu.memory_space<vmem>>, vector<8x256xbf16>
    %1 = arith.extf %0 : vector<8x256xbf16> to vector<8x256xf32>
    %cst = arith.constant dense<0.000000e+00> : vector<8xf32>
    %2 = vector.multi_reduction <add>, %1, %cst [1] : vector<8x256xf32> to vector<8xf32>
    %3 = vector.shape_cast %2 : vector<8xf32> to vector<8x1xf32>
    %cst_1 = arith.constant 3.906250e-03 : f32
    %4 = vector.broadcast %cst_1 : f32 to vector<8x1xf32>
    %5 = arith.mulf %3, %4 : vector<8x1xf32>
    %6 = arith.mulf %1, %1 : vector<8x256xf32>
    %cst_2 = arith.constant dense<0.000000e+00> : vector<8xf32>
    %7 = vector.multi_reduction <add>, %6, %cst_2 [1] : vector<8x256xf32> to vector<8xf32>
    %8 = vector.shape_cast %7 : vector<8xf32> to vector<8x1xf32>
    %cst_3 = arith.constant 3.906250e-03 : f32
    %9 = vector.broadcast %cst_3 : f32 to vector<8x1xf32>
    %10 = arith.mulf %8, %9 : vector<8x1xf32>
    %11 = arith.mulf %5, %5 : vector<8x1xf32>
    %12 = arith.subf %10, %11 : vector<8x1xf32>
    %cst_4 = arith.constant 0.000000e+00 : f32
    %13 = vector.broadcast %cst_4 : f32 to vector<8x1xf32>
    %14 = arith.maximumf %12, %13 : vector<8x1xf32>
    %15 = vector.broadcast %5 : vector<8x1xf32> to vector<8x256xf32>
    %16 = arith.subf %1, %15 : vector<8x256xf32>
    %cst_5 = arith.constant 9.99999974E-6 : f32
    %17 = vector.broadcast %cst_5 : f32 to vector<8x1xf32>
    %18 = arith.addf %14, %17 : vector<8x1xf32>
    %19 = math.rsqrt %18 : vector<8x1xf32>
    %20 = vector.broadcast %19 : vector<8x1xf32> to vector<8x256xf32>
    %21 = arith.mulf %16, %20 : vector<8x256xf32>
    %22 = arith.truncf %21 : vector<8x256xf32> to vector<8x256xbf16>
    %c0_6 = arith.constant 0 : index
    %c0_7 = arith.constant 0 : index
    %23 = vector.load %arg2[%c0_6, %c0_7] : memref<256x128xbf16, #tpu.memory_space<vmem>>, vector<256x128xbf16>
    %cst_8 = arith.constant dense<0.000000e+00> : vector<8x128xf32>
    %24 = tpu.matmul %22, %23, %cst_8 {dimension_numbers = #tpu.dot_dimension_numbers<[1], [0], [0], [1], [0, 0, 1, 1], [], []>} : vector<8x256xbf16>, vector<256x128xbf16>, vector<8x128xf32> -> vector<8x128xf32>
    %c0_9 = arith.constant 0 : index
    %c0_10 = arith.constant 0 : index
    %25 = vector.load %arg3[%c0_9, %c0_10] : memref<3x128xf32, #tpu.memory_space<vmem>>, vector<3x128xf32>
    %26 = vector.extract_strided_slice %25 {offsets = [0, 0], sizes = [1, 128], strides = [1, 1]} : vector<3x128xf32> to vector<1x128xf32>
    %27 = vector.broadcast %26 : vector<1x128xf32> to vector<8x128xf32>
    %28 = arith.addf %24, %27 : vector<8x128xf32>
    %cst_11 = arith.constant dense<0.000000e+00> : vector<8xf32>
    %29 = vector.multi_reduction <add>, %28, %cst_11 [1] : vector<8x128xf32> to vector<8xf32>
    %30 = vector.shape_cast %29 : vector<8xf32> to vector<8x1xf32>
    %cst_12 = arith.constant 3.125000e-02 : f32
    %31 = vector.broadcast %cst_12 : f32 to vector<8x1xf32>
    %32 = arith.mulf %30, %31 : vector<8x1xf32>
    %33 = arith.mulf %28, %28 : vector<8x128xf32>
    %cst_13 = arith.constant dense<0.000000e+00> : vector<8xf32>
    %34 = vector.multi_reduction <add>, %33, %cst_13 [1] : vector<8x128xf32> to vector<8xf32>
    %35 = vector.shape_cast %34 : vector<8xf32> to vector<8x1xf32>
    %cst_14 = arith.constant 3.125000e-02 : f32
    %36 = vector.broadcast %cst_14 : f32 to vector<8x1xf32>
    %37 = arith.mulf %35, %36 : vector<8x1xf32>
    %38 = arith.mulf %32, %32 : vector<8x1xf32>
    %39 = arith.subf %37, %38 : vector<8x1xf32>
    %cst_15 = arith.constant 0.000000e+00 : f32
    %40 = vector.broadcast %cst_15 : f32 to vector<8x1xf32>
    %41 = arith.maximumf %39, %40 : vector<8x1xf32>
    %42 = vector.broadcast %32 : vector<8x1xf32> to vector<8x128xf32>
    %43 = arith.subf %28, %42 : vector<8x128xf32>
    %cst_16 = arith.constant 9.99999974E-6 : f32
    %44 = vector.broadcast %cst_16 : f32 to vector<8x1xf32>
    %45 = arith.addf %41, %44 : vector<8x1xf32>
    %46 = math.rsqrt %45 : vector<8x1xf32>
    %47 = vector.broadcast %46 : vector<8x1xf32> to vector<8x128xf32>
    %48 = arith.mulf %43, %47 : vector<8x128xf32>
    %49 = vector.extract_strided_slice %25 {offsets = [1, 0], sizes = [1, 128], strides = [1, 1]} : vector<3x128xf32> to vector<1x128xf32>
    %50 = vector.broadcast %49 : vector<1x128xf32> to vector<8x128xf32>
    %51 = arith.mulf %48, %50 : vector<8x128xf32>
    %52 = vector.extract_strided_slice %25 {offsets = [2, 0], sizes = [1, 128], strides = [1, 1]} : vector<3x128xf32> to vector<1x128xf32>
    %53 = vector.broadcast %52 : vector<1x128xf32> to vector<8x128xf32>
    %54 = arith.addf %51, %53 : vector<8x128xf32>
    %c0_17 = arith.constant 0 : index
    %c0_18 = arith.constant 0 : index
    %55 = vector.load %arg4[%c0_17, %c0_18] : memref<8x128xf32, #tpu.memory_space<vmem>>, vector<8x128xf32>
    tpu.vector_store %arg4[%c0_17, %c0_18], %54 {strides = array<i32>} : memref<8x128xf32, #tpu.memory_space<vmem>>, vector<8x128xf32>,
    return
  }
  func.func @transform_0(%arg0: i32) -> (i32, i32) {
    %c0_i32 = arith.constant 0 : i32
    %c0_i32_0 = arith.constant 0 : i32
    return %arg0, %c0_i32 : i32, i32
  }
  func.func @transform_1(%arg0: i32) -> (i32, i32) {
    %c0_i32 = arith.constant 0 : i32
    %c0_i32_0 = arith.constant 0 : i32
    %c0_i32_1 = arith.constant 0 : i32
    return %c0_i32, %c0_i32_0 : i32, i32
  }
  func.func @transform_2(%arg0: i32) -> (i32, i32) {
    %c0_i32 = arith.constant 0 : i32
    %c0_i32_0 = arith.constant 0 : i32
    %c0_i32_1 = arith.constant 0 : i32
    return %c0_i32, %c0_i32_0 : i32, i32
  }
  func.func @transform_3(%arg0: i32) -> (i32, i32) {
    %c0_i32 = arith.constant 0 : i32
    %c0_i32_0 = arith.constant 0 : i32
    return %arg0, %c0_i32 : i32, i32
  }
}

</mosaic_0001>

<llo_original>
// kernel: tpu_custom_call.1
$region0: #{tpu_custom_call.1}
  #allocation0 [shape = 'u32[]', space=smem, size = 0x4, offset = 0x4, fixed_abs, tag = 'smem constant byte address 0x4 - core index']
  #allocation1 [shape = 'u32[144,128]{1,0:T(1,128)}', space=vmem, size = 0x12000, scoped, tag = 'internal scratch']
  %s0 = inlined_call_operand.hbm [shape: bf16[8,256], index: 0, kind: input, shape index: {}]
  %s1 = inlined_call_operand.hbm [shape: bf16[256,128], index: 1, kind: input, shape index: {}]
  %s2 = inlined_call_operand.hbm [shape: f32[3,128], index: 2, kind: input, shape index: {}]
  %s3 = inlined_call_operand.hbm [shape: f32[8,128], index: 3, kind: output, shape index: {}]
  %s4 = sld [smem:[#allocation0]]
  $region34: #{tpu_custom_call.1} parent=0
    _
  %s6 = ssub.s32 1, %s4
  %s7 = scalar_select 0, %s6, %s4
  $region1: #{tpu_custom_call.1} parent=0
    #allocation2 [shape = 'u8[4096]{0}', space=vmem, size = 0x1000, scoped, tag = 'input window, operand 0, single buffered']
    #allocation3 [shape = 's32[1]{0}', space=sflag, size = 0x4, scoped, tag = 'scoped memory for tpu_custom_call.1']
    #allocation4 [shape = 's32[1]{0}', space=sflag, size = 0x4, scoped, tag = 'scoped memory for tpu_custom_call.1']
    #allocation5 [shape = 'u8[65536]{0}', space=vmem, size = 0x10000, scoped, tag = 'input window, operand 1, single buffered']
    #allocation6 [shape = 's32[1]{0}', space=sflag, size = 0x4, scoped, tag = 'scoped memory for tpu_custom_call.1']
    #allocation7 [shape = 'u8[2048]{0}', space=vmem, size = 0x800, scoped, tag = 'input window, operand 2, single buffered']
    #allocation8 [shape = 'u8[4096]{0}', space=vmem, size = 0x1000, scoped, tag = 'output window, operand 0, single buffered']
    %8 = vsyncpa [#allocation3], 0
    %9 = vsyncpa [#allocation6], 0
    %10 = vsyncpa [#allocation4], 0
    // Predicated region
    $region2: #{tpu_custom_call.1} parent=1 // pred_check
      _
    $region3: #{tpu_custom_call.1} parent=1 // pred_check_branch
      %12 = sbr.rel (0) target = $region5
    $region4: #{tpu_custom_call.1} parent=1 // pred_region
      %s14 = ssub.s32 128, 128
      %15 = vsyncadd [#allocation3], %s14
      %s17 = sshll.u32 [#allocation2], 4
      %s18 = int_to_ptr.vmem [resolvable:$true] %s17
      %20 = dma.hbm_to_vmem [thread:$0]  %s0, 128, %s18, [#allocation3]
    $region5: #{tpu_custom_call.1} parent=1 // pred_fallthru
      _
    // Predicated region
    $region6: #{tpu_custom_call.1} parent=1 // pred_check
      _
    $region7: #{tpu_custom_call.1} parent=1 // pred_check_branch
      %22 = sbr.rel (0) target = $region9
    $region8: #{tpu_custom_call.1} parent=1 // pred_region
      %s24 = ssub.s32 2048, 2048
      %25 = vsyncadd [#allocation6], %s24
      %s26 = sshll.u32 [#allocation5], 4
      %s27 = int_to_ptr.vmem [resolvable:$true] %s26
      %32 = dma.hbm_to_vmem [thread:$0]  %s1, 2048, %s27, [#allocation6], 64, 64, 4
    $region9: #{tpu_custom_call.1} parent=1 // pred_fallthru
      _
    // Predicated region
    $region10: #{tpu_custom_call.1} parent=1 // pred_check
      _
    $region11: #{tpu_custom_call.1} parent=1 // pred_check_branch
      %34 = sbr.rel (0) target = $region13
    $region12: #{tpu_custom_call.1} parent=1 // pred_region
      %s36 = ssub.s32 64, 64
      %37 = vsyncadd [#allocation6], %s36
      %s39 = sshll.u32 [#allocation7], 4
      %s40 = int_to_ptr.vmem [resolvable:$true] %s39
      %42 = dma.hbm_to_vmem [thread:$0]  %s2, 64, %s40, [#allocation6]
    $region13: #{tpu_custom_call.1} parent=1 // pred_fallthru
      _
    // Predicated region
    $region14: #{tpu_custom_call.1} parent=1 // pred_check
      _
    $region15: #{tpu_custom_call.1} parent=1 // pred_check_branch
      %44 = sbr.rel (0) target = $region17
    $region16: #{tpu_custom_call.1} parent=1 // pred_region
      %45 = dma.done [#allocation3], 128
    $region17: #{tpu_custom_call.1} parent=1 // pred_fallthru
      _
    // Predicated region
    $region18: #{tpu_custom_call.1} parent=1 // pred_check
      _
    $region19: #{tpu_custom_call.1} parent=1 // pred_check_branch
      %47 = sbr.rel (0) target = $region21
    $region20: #{tpu_custom_call.1} parent=1 // pred_region
      %48 = dma.done [#allocation6], 2048
    $region21: #{tpu_custom_call.1} parent=1 // pred_fallthru
      _
    // Predicated region
    $region22: #{tpu_custom_call.1} parent=1 // pred_check
      _
    $region23: #{tpu_custom_call.1} parent=1 // pred_check_branch
      %50 = sbr.rel (0) target = $region25
    $region24: #{tpu_custom_call.1} parent=1 // pred_region
      %51 = dma.done [#allocation6], 64
    $region25: #{tpu_custom_call.1} parent=1 // pred_fallthru
      _
    %v53 = vld [vmem:[#allocation2] sm:$0xff]
    %v54 = vunpack.c.l.bf16 %v53
    %v55 = vunpack.c.h.bf16 %v53
    %v56 = vadd.f32 %v54, %v55
    %57 = vadd.xlane.f32.xlu0 %v56
    %v58 = vpop.xlane.xlu0 %57
    %v59 = vmul.f32 %v58, 0.00390625
    %v60 = vmul.f32 %v54, %v54
    %v61 = vmul.f32 %v55, %v55
    %v62 = vadd.f32 %v60, %v61
    %63 = vadd.xlane.f32.xlu0 %v62
    %v64 = vpop.xlane.xlu0 %63
    %v65 = vmul.f32 %v64, 0.00390625
    %v66 = vmul.f32 %v59, %v59
    %v67 = vsub.f32 %v65, %v66
    %v68 = vmax.f32 %v67, 0.0
    %v69 = vsub.f32 %v54, %v59
    %v70 = vsub.f32 %v55, %v59
    %v71 = vadd.f32 %v68, 1e-05
    %v72 = vrsqrt.pop %v71
    %v73 = vmul.f32 %v69, %v72
    %v74 = vmul.f32 %v70, %v72
    %v75 = vpack.c.bf16 %v73, %v73
    %v76 = vpack.c.bf16 %v74, %v74
    %v77 = vld [vmem:[#allocation5] sm:$0xf]
    %v78 = vld [vmem:[#allocation5 + $0x4] sm:$0xf]
    %v79 = vld [vmem:[#allocation5 + $0x8] sm:$0xf]
    %v80 = vld [vmem:[#allocation5 + $0xc] sm:$0xf]
    %v81 = vld [vmem:[#allocation5 + $0x10] sm:$0xf]
    %v82 = vld [vmem:[#allocation5 + $0x14] sm:$0xf]
    %v83 = vld [vmem:[#allocation5 + $0x18] sm:$0xf]
    %v84 = vld [vmem:[#allocation5 + $0x1c] sm:$0xf]
    %v85 = vld [vmem:[#allocation5 + $0x20] sm:$0xf]
    %v86 = vld [vmem:[#allocation5 + $0x24] sm:$0xf]
    %v87 = vld [vmem:[#allocation5 + $0x28] sm:$0xf]
    %v88 = vld [vmem:[#allocation5 + $0x2c] sm:$0xf]
    %v89 = vld [vmem:[#allocation5 + $0x30] sm:$0xf]
    %v90 = vld [vmem:[#allocation5 + $0x34] sm:$0xf]
    %v91 = vld [vmem:[#allocation5 + $0x38] sm:$0xf]
    %v92 = vld [vmem:[#allocation5 + $0x3c] sm:$0xf]
    %v93 = vld [vmem:[#allocation5 + $0x40] sm:$0xf]
    %v94 = vld [vmem:[#allocation5 + $0x44] sm:$0xf]
    %v95 = vld [vmem:[#allocation5 + $0x48] sm:$0xf]
    %v96 = vld [vmem:[#allocation5 + $0x4c] sm:$0xf]
    %v97 = vld [vmem:[#allocation5 + $0x50] sm:$0xf]
    %v98 = vld [vmem:[#allocation5 + $0x54] sm:$0xf]
    %v99 = vld [vmem:[#allocation5 + $0x58] sm:$0xf]
    %v100 = vld [vmem:[#allocation5 + $0x5c] sm:$0xf]
    %v101 = vld [vmem:[#allocation5 + $0x60] sm:$0xf]
    %v102 = vld [vmem:[#allocation5 + $0x64] sm:$0xf]
    %v103 = vld [vmem:[#allocation5 + $0x68] sm:$0xf]
    %v104 = vld [vmem:[#allocation5 + $0x6c] sm:$0xf]
    %v105 = vld [vmem:[#allocation5 + $0x70] sm:$0xf]
    %v106 = vld [vmem:[#allocation5 + $0x74] sm:$0xf]
    %v107 = vld [vmem:[#allocation5 + $0x78] sm:$0xf]
    %v108 = vld [vmem:[#allocation5 + $0x7c] sm:$0xf]
    %v109 = vld [vmem:[#allocation7] sm:$0x7]
    %v110 = vlaneseq
    %v111 = vshrl.u32 %v110, 7
    %v112 = vsub.s32 0, %v111
    %v113 = vrot.slane %v109, %v112
    %v146 = vunpack.c.l.b16 %v77
    %v147 = vunpack.c.l.b16 %v78
    %v148 = vunpack.c.l.b16 %v79
    %v149 = vunpack.c.l.b16 %v80
    %v150 = vunpack.c.l.b16 %v81
    %v151 = vunpack.c.l.b16 %v82
    %v152 = vunpack.c.l.b16 %v83
    %v153 = vunpack.c.l.b16 %v84
    %v154 = vunpack.c.l.b16 %v85
    %v155 = vunpack.c.l.b16 %v86
    %v156 = vunpack.c.l.b16 %v87
    %v157 = vunpack.c.l.b16 %v88
    %v158 = vunpack.c.l.b16 %v89
    %v159 = vunpack.c.l.b16 %v90
    %v160 = vunpack.c.l.b16 %v91
    %v161 = vunpack.c.l.b16 %v92
    %v162 = vunpack.c.l.b16 %v93
    %v163 = vunpack.c.l.b16 %v94
    %v164 = vunpack.c.l.b16 %v95
    %v165 = vunpack.c.l.b16 %v96
    %v166 = vunpack.c.l.b16 %v97
    %v167 = vunpack.c.l.b16 %v98
    %v168 = vunpack.c.l.b16 %v99
    %v169 = vunpack.c.l.b16 %v100
    %v170 = vunpack.c.l.b16 %v101
    %v171 = vunpack.c.l.b16 %v102
    %v172 = vunpack.c.l.b16 %v103
    %v173 = vunpack.c.l.b16 %v104
    %v174 = vunpack.c.l.b16 %v105
    %v175 = vunpack.c.l.b16 %v106
    %v176 = vunpack.c.l.b16 %v107
    %v177 = vunpack.c.l.b16 %v108
    %v178 = vpack.c.b16 %v147, %v146
    %v179 = vpack.c.b16 %v149, %v148
    %v180 = vpack.c.b16 %v151, %v150
    %v181 = vpack.c.b16 %v153, %v152
    %v182 = vpack.c.b16 %v155, %v154
    %v183 = vpack.c.b16 %v157, %v156
    %v184 = vpack.c.b16 %v159, %v158
    %v185 = vpack.c.b16 %v161, %v160
    %v186 = vpack.c.b16 %v163, %v162
    %v187 = vpack.c.b16 %v165, %v164
    %v188 = vpack.c.b16 %v167, %v166
    %v189 = vpack.c.b16 %v169, %v168
    %v190 = vpack.c.b16 %v171, %v170
    %v191 = vpack.c.b16 %v173, %v172
    %v192 = vpack.c.b16 %v175, %v174
    %v193 = vpack.c.b16 %v177, %v176
    %210 = vmatprep.subr.bf16.mxu0 0
    %211 = vmatpush1.bf16.msra.mxu0 %v185
    %212 = vmatprep.subr.bf16.mxu0 0
    %213 = vmatpush1.bf16.msra.mxu0 %v184
    %214 = vmatprep.subr.bf16.mxu0 0
    %215 = vmatpush1.bf16.msra.mxu0 %v183
    %216 = vmatprep.subr.bf16.mxu0 0
    %217 = vmatpush1.bf16.msra.mxu0 %v182
    %218 = vmatprep.subr.bf16.mxu0 0
    %219 = vmatpush1.bf16.msra.mxu0 %v181
    %220 = vmatprep.subr.bf16.mxu0 0
    %221 = vmatpush1.bf16.msra.mxu0 %v180
    %222 = vmatprep.subr.bf16.mxu0 0
    %223 = vmatpush1.bf16.msra.mxu0 %v179
    %224 = vmatprep.subr.bf16.mxu0 0
    %225 = vmatpush1.bf16.msra.mxu0 %v178
    %226 = vmatprep.subr.bf16.mxu0 0
    %227 = vmatpush2.bf16.msra.mxu0 %v193
    %228 = vmatprep.subr.bf16.mxu0 0
    %229 = vmatpush2.bf16.msra.mxu0 %v192
    %230 = vmatprep.subr.bf16.mxu0 0
    %231 = vmatpush2.bf16.msra.mxu0 %v191
    %232 = vmatprep.subr.bf16.mxu0 0
    %233 = vmatpush2.bf16.msra.mxu0 %v190
    %234 = vmatprep.subr.bf16.mxu0 0
    %235 = vmatpush2.bf16.msra.mxu0 %v189
    %236 = vmatprep.subr.bf16.mxu0 0
    %237 = vmatpush2.bf16.msra.mxu0 %v188
    %238 = vmatprep.subr.bf16.mxu0 0
    %239 = vmatpush2.bf16.msra.mxu0 %v187
    %240 = vmatprep.subr.bf16.mxu0 0
    %241 = vmatpush2.bf16.msra.mxu0 %v186
    %242 = vmatprep.mubr.bf16.mxu0 %v76
    %243 = vmatmul.mubr.bf16.gmra.mxu0 %v75
    %v244 = vpop.f32.mrf.mxu0
    %v245 = vadd.f32 %v113, %v244
    %v246 = vpop.f32.mrf.mxu0
    %v247 = vpop.f32.mrf.mxu0
    %v248 = vpop.f32.mrf.mxu0
    %249 = vdwg.mxu0
    %250 = vadd.xlane.f32.xlu0 %v245
    %v251 = vpop.xlane.xlu0 %250
    %v252 = vmul.f32 %v251, 0.03125
    %v253 = vmul.f32 %v245, %v245
    %254 = vadd.xlane.f32.xlu0 %v253
    %v255 = vpop.xlane.xlu0 %254
    %v256 = vmul.f32 %v255, 0.03125
    %v257 = vmul.f32 %v252, %v252
    %v258 = vsub.f32 %v256, %v257
    %v259 = vmax.f32 %v258, 0.0
    %v260 = vsub.f32 %v245, %v252
    %v261 = vadd.f32 %v259, 1e-05
    %v262 = vrsqrt.pop %v261
    %v263 = vmul.f32 %v260, %v262
    %v264 = vlaneseq
    %v265 = vshrl.u32 %v264, 7
    %v266 = vsub.s32 1, %v265
    %v267 = vrot.slane %v109, %v266
    %v268 = vmul.f32 %v263, %v267
    %v269 = vlaneseq
    %v270 = vshrl.u32 %v269, 7
    %v271 = vsub.s32 2, %v270
    %v272 = vrot.slane %v109, %v271
    %v273 = vadd.f32 %v268, %v272
    %274 = vst [vmem:[#allocation8] sm:$0xff] %v273
    // Predicated region
    $region26: #{tpu_custom_call.1} parent=1 // pred_check
      _
    $region27: #{tpu_custom_call.1} parent=1 // pred_check_branch
      %276 = sbr.rel (0) target = $region29
    $region28: #{tpu_custom_call.1} parent=1 // pred_region
      %s278 = ssub.s32 128, 128
      %279 = vsyncadd [#allocation4], %s278
      %s281 = sshll.u32 [#allocation8], 4
      %s282 = int_to_ptr.vmem [resolvable:$true] %s281
      %284 = dma.vmem_to_hbm [thread:$0]  %s282, 128, %s3, [#allocation4]
    $region29: #{tpu_custom_call.1} parent=1 // pred_fallthru
      _
    // Predicated region
    $region30: #{tpu_custom_call.1} parent=1 // pred_check
      _
    $region31: #{tpu_custom_call.1} parent=1 // pred_check_branch
      %286 = sbr.rel (0) target = $region33
    $region32: #{tpu_custom_call.1} parent=1 // pred_region
      %287 = dma.done [#allocation4], 128
    $region33: #{tpu_custom_call.1} parent=1 // pred_fallthru
      _
    %288 = vsyncpa [#allocation3], 1
    %289 = vsyncpa [#allocation6], 1
    %290 = vsyncpa [#allocation4], 1

</llo_original>
